<compile_context>
chip_gen: v6e
topology: v6e:2x2x1
jax: 0.10.0
libtpu: 0.0.40
codegen_flags: <defaults>
</compile_context>

<pallas_src>
import functools

import jax
import jax.numpy as jnp
from jax.experimental import pallas as pl
from jax.experimental.pallas import tpu as pltpu

NEG_INF_BIAS = -1e30  # bias for padded class columns -> softmax prob exactly 0


def ensemble_kernel(x_ref, w_ref, b_ref, out_ref, acc_ref, *, n_models, k_pad):
    """Grid = (batch_tiles [parallel], f_tiles [arbitrary]).

    x_ref:   (tb, tf)        bf16 activation tile
    w_ref:   (tf, M*Kpad)    bf16 stacked member weights tile
    b_ref:   (1,  M*Kpad)    f32 stacked biases (padded cols = -1e30)
    out_ref: (tb, Kpad)      f32 mean probabilities (resident over f axis)
    acc_ref: (tb, M*Kpad)    f32 logits accumulator (VMEM scratch)
    """
    f = pl.program_id(1)
    nf = pl.num_programs(1)

    @pl.when(f == 0)
    def _():
        acc_ref[...] = jnp.zeros_like(acc_ref)

    # One lane-dense MXU matmul covers all members: (tb, tf) @ (tf, M*Kpad).
    acc_ref[...] += jnp.dot(
        x_ref[...], w_ref[...], preferred_element_type=jnp.float32
    )

    @pl.when(f == nf - 1)
    def _():
        logits = acc_ref[...] + b_ref[...]          # (tb, M*Kpad)
        inv_m = 1.0 / float(n_models)
        probs_sum = None
        for m in range(n_models):                   # static unroll, M is tiny
            lg = logits[:, m * k_pad:(m + 1) * k_pad]          # 128-aligned slice
            mx = jnp.max(lg, axis=-1, keepdims=True)
            e = jnp.exp(lg - mx)
            inv = pl.reciprocal(jnp.sum(e, axis=-1, keepdims=True), approx=True)
            p = e * inv
            probs_sum = p if probs_sum is None else probs_sum + p
        out_ref[...] = probs_sum * inv_m


def _pick_batch_tile(batch):
    for cand in (512, 256, 128, 64, 32, 16, 8):
        if batch >= cand and batch % cand == 0:
            return cand
    return batch


def ensemble_forward(x_nchw, weights, biases, *, tf=256):
    """x_nchw: (B, C, H, W) f32; weights: (M, F, K) f32; biases: (M, 1, K) f32."""
    B = x_nchw.shape[0]
    M, F, K = weights.shape

    k_pad = 128 * ((K + 127) // 128)              # lane-dense class dim
    f_pad = tf * ((F + tf - 1) // tf)             # F padded to the tile size
    mk = M * k_pad
    tb = _pick_batch_tile(B)

    # --- wrapper-side layout plumbing (pad + stack members, cast to bf16) ---
    x_flat = x_nchw.reshape(B, F)
    if f_pad != F:
        x_flat = jnp.pad(x_flat, ((0, 0), (0, f_pad - F)))
    x_bf16 = x_flat.astype(jnp.bfloat16)

    w_pad = jnp.pad(weights, ((0, 0), (0, f_pad - F), (0, k_pad - K)))
    w_stacked = jnp.transpose(w_pad, (1, 0, 2)).reshape(f_pad, mk)
    w_bf16 = w_stacked.astype(jnp.bfloat16)

    b_full = jnp.full((M, k_pad), NEG_INF_BIAS, jnp.float32)
    b_full = b_full.at[:, :K].set(biases[:, 0, :].astype(jnp.float32))
    b_stacked = b_full.reshape(1, mk)

    n_b = B // tb
    n_f = f_pad // tf

    # VMEM budget with headroom; stay well under v7x's 64 MiB physical VMEM.
    est = (2 * tb * tf * 2        # x double buffer (bf16)
           + 2 * tf * mk * 2      # weight double buffer (bf16)
           + 2 * tb * k_pad * 4   # output double buffer (f32)
           + 2 * mk * 4           # bias
           + tb * mk * 4)         # logits scratch
    vmem_limit = int(min(max(4 * est, 16 << 20), 48 << 20))

    kernel = functools.partial(ensemble_kernel, n_models=M, k_pad=k_pad)

    out_padded = pl.pallas_call(
        kernel,
        out_shape=jax.ShapeDtypeStruct((B, k_pad), jnp.float32),
        grid_spec=pltpu.PrefetchScalarGridSpec(
            num_scalar_prefetch=0,
            grid=(n_b, n_f),
            in_specs=[
                pl.BlockSpec((tb, tf), lambda b, f: (b, f)),
                # NOTE: if weight DMA is still exposed after F-tiling, add
                # pipeline_mode=pl.Buffered(3) here (costs one extra tile of VMEM).
                pl.BlockSpec((tf, mk), lambda b, f: (f, 0)),
                pl.BlockSpec((1, mk), lambda b, f: (0, 0)),
            ],
            out_specs=pl.BlockSpec((tb, k_pad), lambda b, f: (b, 0)),
            scratch_shapes=[pltpu.VMEM((tb, mk), jnp.float32)],
        ),
        compiler_params=pltpu.CompilerParams(
            dimension_semantics=("parallel", "arbitrary"),
            vmem_limit_bytes=vmem_limit,
        ),
    )(x_bf16, w_bf16, b_stacked)

    return out_padded[:, :K]


def ensemble_forward_ref(x_nchw, weights, biases):
    """Pure-JAX reference mirroring the kernel's bf16 streaming precision."""
    B = x_nchw.shape[0]
    M, F, K = weights.shape
    x = x_nchw.reshape(B, F).astype(jnp.bfloat16).astype(jnp.float32)
    w = weights.astype(jnp.bfloat16).astype(jnp.float32)
    probs = []
    for m in range(M):
        logits = x @ w[m] + biases[m, 0]
        probs.append(jax.nn.softmax(logits, axis=1))
    return jnp.mean(jnp.stack(probs), axis=0)


if __name__ == "__main__":
    B, C, H, W = 2, 4, 16, 16
    NUM_CLASSES = 16
    NUM_MODELS = 3
    F = C * H * W

    key = jax.random.PRNGKey(0)
    kx, kw, kb = jax.random.split(key, 3)

    x = jax.random.normal(kx, (B, C, H, W), dtype=jnp.float32)
    weights = 0.05 * jax.random.normal(kw, (NUM_MODELS, F, NUM_CLASSES), dtype=jnp.float32)
    biases = 0.1 * jax.random.normal(kb, (NUM_MODELS, 1, NUM_CLASSES), dtype=jnp.float32)

    out = ensemble_forward(x, weights, biases)
    out = jax.block_until_ready(out)

    ref = ensemble_forward_ref(x, weights, biases)
    assert out.shape == (B, NUM_CLASSES)
    # tolerances absorb approx-reciprocal (EUP) and MXU accumulation-order noise
    assert jnp.allclose(out, ref, atol=2e-3, rtol=2e-3), "mismatch vs JAX reference"
    assert jnp.allclose(jnp.sum(out, axis=1), 1.0, atol=2e-3), "probs must sum to 1"

    print("KERNEL_OK")
</pallas_src>

<mosaic_0001>
module attributes {stable_mosaic.version = 11 : i64} {
  func.func @ensemble_kernel(%arg0: i32, %arg1: i32, %arg2: memref<2x256xbf16, #tpu.memory_space<vmem>>, %arg3: memref<256x384xbf16, #tpu.memory_space<vmem>>, %arg4: memref<1x384xf32, #tpu.memory_space<vmem>>, %arg5: memref<2x128xf32, #tpu.memory_space<vmem>>, %arg6: memref<2x384xf32, #tpu.memory_space<vmem>>) attributes {dimension_semantics = [#tpu.dimension_semantics<parallel>, #tpu.dimension_semantics<arbitrary>], iteration_bounds = array<i64: 1, 4>, scalar_prefetch = 0 : i64, scratch_operands = 1 : i64, tpu.core_type = #tpu.core_type<tc>, window_params = [{transform_indices = @transform_0, window_bounds = array<i64: 2, 256>}, {transform_indices = @transform_1, window_bounds = array<i64: 256, 384>}, {pipeline_mode = #tpu.pipeline_mode<synchronous>, transform_indices = @transform_2, window_bounds = array<i64: 1, 384>}, {transform_indices = @transform_3, window_bounds = array<i64: 2, 128>}]} {
    %c0_i32 = arith.constant 0 : i32
    %0 = arith.cmpi eq, %arg1, %c0_i32 : i32
    %1 = arith.extui %0 : i1 to i32
    %c0_i32_0 = arith.constant 0 : i32
    %2 = arith.cmpi ne, %1, %c0_i32_0 : i32
    scf.if %2 {
      %cst_9 = arith.constant 0.000000e+00 : f32
      %12 = vector.broadcast %cst_9 : f32 to vector<2x384xf32>
      %c0_10 = arith.constant 0 : index
      %c0_11 = arith.constant 0 : index
      %13 = vector.load %arg6[%c0_10, %c0_11] : memref<2x384xf32, #tpu.memory_space<vmem>>, vector<2x384xf32>
      tpu.vector_store %arg6[%c0_10, %c0_11], %12 {strides = array<i32>} : memref<2x384xf32, #tpu.memory_space<vmem>>, vector<2x384xf32>,
    } else {
    }
    %c0 = arith.constant 0 : index
    %c0_1 = arith.constant 0 : index
    %3 = vector.load %arg6[%c0, %c0_1] : memref<2x384xf32, #tpu.memory_space<vmem>>, vector<2x384xf32>
    %c0_2 = arith.constant 0 : index
    %c0_3 = arith.constant 0 : index
    %4 = vector.load %arg2[%c0_2, %c0_3] : memref<2x256xbf16, #tpu.memory_space<vmem>>, vector<2x256xbf16>
    %c0_4 = arith.constant 0 : index
    %c0_5 = arith.constant 0 : index
    %5 = vector.load %arg3[%c0_4, %c0_5] : memref<256x384xbf16, #tpu.memory_space<vmem>>, vector<256x384xbf16>
    %cst = arith.constant dense<0.000000e+00> : vector<2x384xf32>
    %6 = tpu.matmul %4, %5, %cst {dimension_numbers = #tpu.dot_dimension_numbers<[1], [0], [0], [1], [0, 0, 1, 1], [], []>} : vector<2x256xbf16>, vector<256x384xbf16>, vector<2x384xf32> -> vector<2x384xf32>
    %7 = arith.addf %3, %6 : vector<2x384xf32>
    %c0_6 = arith.constant 0 : index
    %c0_7 = arith.constant 0 : index
    %8 = vector.load %arg6[%c0_6, %c0_7] : memref<2x384xf32, #tpu.memory_space<vmem>>, vector<2x384xf32>
    tpu.vector_store %arg6[%c0_6, %c0_7], %7 {strides = array<i32>} : memref<2x384xf32, #tpu.memory_space<vmem>>, vector<2x384xf32>,
    %c3_i32 = arith.constant 3 : i32
    %9 = arith.cmpi eq, %arg1, %c3_i32 : i32
    %10 = arith.extui %9 : i1 to i32
    %c0_i32_8 = arith.constant 0 : i32
    %11 = arith.cmpi ne, %10, %c0_i32_8 : i32
    scf.if %11 {
      %c0_9 = arith.constant 0 : index
      %c0_10 = arith.constant 0 : index
      %12 = vector.load %arg6[%c0_9, %c0_10] : memref<2x384xf32, #tpu.memory_space<vmem>>, vector<2x384xf32>
      %c0_11 = arith.constant 0 : index
      %c0_12 = arith.constant 0 : index
      %13 = vector.load %arg4[%c0_11, %c0_12] : memref<1x384xf32, #tpu.memory_space<vmem>>, vector<1x384xf32>
      %14 = vector.broadcast %13 : vector<1x384xf32> to vector<2x384xf32>
      %15 = arith.addf %12, %14 : vector<2x384xf32>
      %16 = vector.extract_strided_slice %15 {offsets = [0, 0], sizes = [2, 128], strides = [1, 1]} : vector<2x384xf32> to vector<2x128xf32>
      %cst_13 = arith.constant dense<0xFF800000> : vector<2xf32>
      %17 = vector.multi_reduction <maximumf>, %16, %cst_13 [1] : vector<2x128xf32> to vector<2xf32>
      %18 = vector.shape_cast %17 : vector<2xf32> to vector<2x1xf32>
      %19 = vector.broadcast %18 : vector<2x1xf32> to vector<2x128xf32>
      %20 = arith.subf %16, %19 : vector<2x128xf32>
      %21 = math.exp %20 : vector<2x128xf32>
      %cst_14 = arith.constant dense<0.000000e+00> : vector<2xf32>
      %22 = vector.multi_reduction <add>, %21, %cst_14 [1] : vector<2x128xf32> to vector<2xf32>
      %23 = vector.shape_cast %22 : vector<2xf32> to vector<2x1xf32>
      %24 = tpu.reciprocal %23 {approx = true} : vector<2x1xf32> -> vector<2x1xf32>
      %25 = vector.broadcast %24 : vector<2x1xf32> to vector<2x128xf32>
      %26 = arith.mulf %21, %25 : vector<2x128xf32>
      %27 = vector.extract_strided_slice %15 {offsets = [0, 128], sizes = [2, 128], strides = [1, 1]} : vector<2x384xf32> to vector<2x128xf32>
      %cst_15 = arith.constant dense<0xFF800000> : vector<2xf32>
      %28 = vector.multi_reduction <maximumf>, %27, %cst_15 [1] : vector<2x128xf32> to vector<2xf32>
      %29 = vector.shape_cast %28 : vector<2xf32> to vector<2x1xf32>
      %30 = vector.broadcast %29 : vector<2x1xf32> to vector<2x128xf32>
      %31 = arith.subf %27, %30 : vector<2x128xf32>
      %32 = math.exp %31 : vector<2x128xf32>
      %cst_16 = arith.constant dense<0.000000e+00> : vector<2xf32>
      %33 = vector.multi_reduction <add>, %32, %cst_16 [1] : vector<2x128xf32> to vector<2xf32>
      %34 = vector.shape_cast %33 : vector<2xf32> to vector<2x1xf32>
      %35 = tpu.reciprocal %34 {approx = true} : vector<2x1xf32> -> vector<2x1xf32>
      %36 = vector.broadcast %35 : vector<2x1xf32> to vector<2x128xf32>
      %37 = arith.mulf %32, %36 : vector<2x128xf32>
      %38 = arith.addf %26, %37 : vector<2x128xf32>
      %39 = vector.extract_strided_slice %15 {offsets = [0, 256], sizes = [2, 128], strides = [1, 1]} : vector<2x384xf32> to vector<2x128xf32>
      %cst_17 = arith.constant dense<0xFF800000> : vector<2xf32>
      %40 = vector.multi_reduction <maximumf>, %39, %cst_17 [1] : vector<2x128xf32> to vector<2xf32>
      %41 = vector.shape_cast %40 : vector<2xf32> to vector<2x1xf32>
      %42 = vector.broadcast %41 : vector<2x1xf32> to vector<2x128xf32>
      %43 = arith.subf %39, %42 : vector<2x128xf32>
      %44 = math.exp %43 : vector<2x128xf32>
      %cst_18 = arith.constant dense<0.000000e+00> : vector<2xf32>
      %45 = vector.multi_reduction <add>, %44, %cst_18 [1] : vector<2x128xf32> to vector<2xf32>
      %46 = vector.shape_cast %45 : vector<2xf32> to vector<2x1xf32>
      %47 = tpu.reciprocal %46 {approx = true} : vector<2x1xf32> -> vector<2x1xf32>
      %48 = vector.broadcast %47 : vector<2x1xf32> to vector<2x128xf32>
      %49 = arith.mulf %44, %48 : vector<2x128xf32>
      %50 = arith.addf %38, %49 : vector<2x128xf32>
      %cst_19 = arith.constant 0.333333343 : f32
      %51 = vector.broadcast %cst_19 : f32 to vector<2x128xf32>
      %52 = arith.mulf %50, %51 : vector<2x128xf32>
      %c0_20 = arith.constant 0 : index
      %c0_21 = arith.constant 0 : index
      %53 = vector.load %arg5[%c0_20, %c0_21] : memref<2x128xf32, #tpu.memory_space<vmem>>, vector<2x128xf32>
      tpu.vector_store %arg5[%c0_20, %c0_21], %52 {strides = array<i32>} : memref<2x128xf32, #tpu.memory_space<vmem>>, vector<2x128xf32>,
    } else {
    }
    return
  }
  func.func @transform_0(%arg0: i32, %arg1: i32) -> (i32, i32) {
    %c0_i32 = arith.constant 0 : i32
    return %arg0, %arg1 : i32, i32
  }
  func.func @transform_1(%arg0: i32, %arg1: i32) -> (i32, i32) {
    %c0_i32 = arith.constant 0 : i32
    %c0_i32_0 = arith.constant 0 : i32
    return %arg1, %c0_i32 : i32, i32
  }
  func.func @transform_2(%arg0: i32, %arg1: i32) -> (i32, i32) {
    %c0_i32 = arith.constant 0 : i32
    %c0_i32_0 = arith.constant 0 : i32
    %c0_i32_1 = arith.constant 0 : i32
    return %c0_i32, %c0_i32_0 : i32, i32
  }
  func.func @transform_3(%arg0: i32, %arg1: i32) -> (i32, i32) {
    %c0_i32 = arith.constant 0 : i32
    %c0_i32_0 = arith.constant 0 : i32
    return %arg0, %c0_i32 : i32, i32
  }
}

</mosaic_0001>

<llo_original>
// kernel: tpu_custom_call.1
$region0: #{tpu_custom_call.1}
  #allocation0 [shape = 'u32[]', space=smem, size = 0x4, offset = 0x4, fixed_abs, tag = 'smem constant byte address 0x4 - core index']
  #allocation1 [shape = 'u32[144,128]{1,0:T(1,128)}', space=vmem, size = 0x12000, scoped, tag = 'internal scratch']
  #allocation2 [shape = 'f32[2,384]{1,0:T(2,128)}', space=vmem, size = 0xc00, scoped, tag = 'scratch operand']
  %s0 = inlined_call_operand.hbm [shape: bf16[2,1024], index: 0, kind: input, shape index: {}]
  %s1 = inlined_call_operand.hbm [shape: bf16[1024,384], index: 1, kind: input, shape index: {}]
  %s2 = inlined_call_operand.vmem [shape: f32[1,384], index: 2, kind: input, shape index: {}]
  %s3 = inlined_call_operand.hbm [shape: f32[2,128], index: 3, kind: output, shape index: {}]
  %s4 = sld [smem:[#allocation0]]
  $region61: #{tpu_custom_call.1} parent=0
    _
  %s6 = ssub.s32 1, %s4
  %s7 = scalar_select 0, %s6, %s4
  $region1: #{tpu_custom_call.1} parent=0
    #allocation3 [shape = 'u8[2048]{0}', space=vmem, size = 0x800, scoped, tag = 'input window, operand 0']
    #allocation4 [shape = 's32[2]{0}', space=sflag, size = 0x8, scoped, tag = 'scoped memory for tpu_custom_call.1']
    #allocation5 [shape = 's32[2]{0}', space=sflag, size = 0x8, scoped, tag = 'scoped memory for tpu_custom_call.1']
    #allocation6 [shape = 'u8[393216]{0}', space=vmem, size = 0x60000, scoped, tag = 'input window, operand 1']
    #allocation7 [shape = 's32[2]{0}', space=sflag, size = 0x8, scoped, tag = 'scoped memory for tpu_custom_call.1']
    #allocation8 [shape = 'u8[1024]{0}', space=vmem, size = 0x400, scoped, tag = 'output window, operand 0, single buffered']
    %8 = vsyncpa [#allocation4], 0
    %s9 = scalar_lea.sflag [#allocation4], 1
    %10 = vsyncpa %s9, 0
    %11 = vsyncpa [#allocation7], 0
    %s12 = scalar_lea.sflag [#allocation7], 1
    %13 = vsyncpa %s12, 0
    %14 = vsyncpa [#allocation5], 0
    loop: start=0, step=1, limit=6
    $region2: #{tpu_custom_call.1} parent=1 // loop_pre_header
      _
    $region3: #{tpu_custom_call.1} parent=1 // loop_header
      %s16 = sphi 0, %s20
      %p17 = scmp.ge.s32.totalorder %s16, 6
      %s23 = sphi 0, %s35
      %s24 = sphi 0, %s31
      %s25 = sphi 0, %s23
      %s26 = sphi 0, %s24
      %s27 = sphi 0, %s25
      %s28 = sphi 0, %s26
      %s40 = sphi 0, %s42
      %s43 = sphi 0, %s40
      %s44 = sphi 0, %s43
      %s60 = sphi 0, %s44
      %s66 = sphi 0, %s68
      %s69 = sphi 0, %s66
      %s70 = sphi 0, %s69
      %s86 = sphi 0, %s70
      %s90 = sphi 0, %s90
      %s92 = sphi 0, %s90
      %s93 = sphi 0, %s92
      %s107 = sphi 0, %s93
      %s113 = sphi 0, %s115
      %s116 = sphi 0, %s113
      %s117 = sphi 0, %s116
      %s133 = sphi 0, %s117
    $region4: #{tpu_custom_call.1} parent=1 // loop_header_branch
      %19 = sbr.rel (%p17) target = $region8
    $region5: #{tpu_custom_call.1} parent=1 // loop_body
      %s21 = ssub.s32 %s16, 1
      %s22 = ssub.s32 %s16, 2
      %s29 = sadd.s32 1, %s24
      %p30 = scmp.ge.s32.totalorder %s29, 4
      %s31 = scalar_select %p30, 0, %s29
      %s32 = sadd.s32 1, %s23
      %s33 = scalar_select %p30, %s32, %s23
      %p34 = scmp.ge.s32.totalorder %s33, 1
      %s35 = scalar_select %p34, 0, %s33
      %s36 = ssub.s32 %s23, %s35
      %s37 = ssub.s32 %s24, %s31
      %s38 = sor.u32 %s36, %s37
      %p39 = scmp.eq.s32.totalorder %s38, 0
      %s41 = sadd.s32 %s40, 1
      %s42 = scalar_select %p39, %s40, %s41
      %p45 = pneg %p39
      %p46 = scmp.eq.s32.totalorder %s16, 3
      %p47 = por %p45, %p46
      %p48 = scmp.ne.s32.totalorder %s40, %s43
      %p49 = scmp.eq.s32.totalorder %s16, 0
      %p50 = por %p48, %p49
      %p51 = scmp.ne.s32.totalorder %s40, %s43
      %p52 = scmp.eq.s32.totalorder %s21, 3
      %p53 = por %p51, %p52
      %p54 = scmp.ne.s32.totalorder %s43, %s44
      %p55 = scmp.eq.s32.totalorder %s21, 0
      %p56 = por %p54, %p55
      %p57 = scmp.ne.s32.totalorder %s43, %s44
      %p58 = scmp.eq.s32.totalorder %s22, 3
      %p59 = por %p57, %p58
      %p61 = scmp.ne.s32.totalorder %s44, %s60
      %p62 = scmp.eq.s32.totalorder %s22, 0
      %p63 = por %p61, %p62
      %s64 = ssub.s32 %s24, %s31
      %p65 = scmp.eq.s32.totalorder %s64, 0
      %s67 = sadd.s32 %s66, 1
      %s68 = scalar_select %p65, %s66, %s67
      %p71 = pneg %p65
      %p72 = scmp.eq.s32.totalorder %s16, 3
      %p73 = por %p71, %p72
      %p74 = scmp.ne.s32.totalorder %s66, %s69
      %p75 = scmp.eq.s32.totalorder %s16, 0
      %p76 = por %p74, %p75
      %p77 = scmp.ne.s32.totalorder %s66, %s69
      %p78 = scmp.eq.s32.totalorder %s21, 3
      %p79 = por %p77, %p78
      %p80 = scmp.ne.s32.totalorder %s69, %s70
      %p81 = scmp.eq.s32.totalorder %s21, 0
      %p82 = por %p80, %p81
      %p83 = scmp.ne.s32.totalorder %s69, %s70
      %p84 = scmp.eq.s32.totalorder %s22, 3
      %p85 = por %p83, %p84
      %p87 = scmp.ne.s32.totalorder %s70, %s86
      %p88 = scmp.eq.s32.totalorder %s22, 0
      %p89 = por %p87, %p88
      %s91 = sadd.s32 %s90, 1
      %p94 = scmp.eq.s32.totalorder %s16, 3
      %p95 = scmp.ne.s32.totalorder %s90, %s92
      %p96 = scmp.eq.s32.totalorder %s16, 0
      %p97 = por %p95, %p96
      %p98 = scmp.ne.s32.totalorder %s90, %s92
      %p99 = scmp.eq.s32.totalorder %s21, 3
      %p100 = por %p98, %p99
      %p101 = scmp.ne.s32.totalorder %s92, %s93
      %p102 = scmp.eq.s32.totalorder %s21, 0
      %p103 = por %p101, %p102
      %p104 = scmp.ne.s32.totalorder %s92, %s93
      %p105 = scmp.eq.s32.totalorder %s22, 3
      %p106 = por %p104, %p105
      %p108 = scmp.ne.s32.totalorder %s93, %s107
      %p109 = scmp.eq.s32.totalorder %s22, 0
      %p110 = por %p108, %p109
      %s111 = ssub.s32 %s23, %s35
      %p112 = scmp.eq.s32.totalorder %s111, 0
      %s114 = sadd.s32 %s113, 1
      %s115 = scalar_select %p112, %s113, %s114
      %p118 = pneg %p112
      %p119 = scmp.eq.s32.totalorder %s16, 3
      %p120 = por %p118, %p119
      %p121 = scmp.ne.s32.totalorder %s113, %s116
      %p122 = scmp.eq.s32.totalorder %s16, 0
      %p123 = por %p121, %p122
      %p124 = scmp.ne.s32.totalorder %s113, %s116
      %p125 = scmp.eq.s32.totalorder %s21, 3
      %p126 = por %p124, %p125
      %p127 = scmp.ne.s32.totalorder %s116, %s117
      %p128 = scmp.eq.s32.totalorder %s21, 0
      %p129 = por %p127, %p128
      %p130 = scmp.ne.s32.totalorder %s116, %s117
      %p131 = scmp.eq.s32.totalorder %s22, 3
      %p132 = por %p130, %p131
      %p134 = scmp.ne.s32.totalorder %s117, %s133
      %p135 = scmp.eq.s32.totalorder %s22, 0
      %p136 = por %p134, %p135
      %p137 = scmp.le.s32.totalorder 1, %s16
      %p138 = scmp.lt.s32.totalorder %s16, 5
      %p139 = pnand %p137, %p138
      %p140 = pneg %p139
      // Predicated region
      $region9: #{tpu_custom_call.1} parent=5 // pred_check
        _
      $region10: #{tpu_custom_call.1} parent=5 // pred_check_branch
        %142 = sbr.rel (%p139) target = $region12
      $region11: #{tpu_custom_call.1} parent=5 // pred_region
        %s143 = ssub.s32 %s16, 1
        // Predicated region
        $region13: #{tpu_custom_call.1} parent=11 // pred_check
          %p144 = pneg %p103
        $region14: #{tpu_custom_call.1} parent=11 // pred_check_branch
          %146 = sbr.rel (%p144) target = $region16
        $region15: #{tpu_custom_call.1} parent=11 // pred_region
          _
        $region16: #{tpu_custom_call.1} parent=11 // pred_fallthru
          _
      $region12: #{tpu_custom_call.1} parent=5 // pred_fallthru
        _
      %p147 = scmp.lt.s32.totalorder %s16, 4
      // Predicated region
      $region17: #{tpu_custom_call.1} parent=5 // pred_check
        %p148 = pneg %p147
      $region18: #{tpu_custom_call.1} parent=5 // pred_check_branch
        %150 = sbr.rel (%p148) target = $region20
      $region19: #{tpu_custom_call.1} parent=5 // pred_region
        // Predicated region
        $region21: #{tpu_custom_call.1} parent=19 // pred_check
          %p151 = pneg %p50
        $region22: #{tpu_custom_call.1} parent=19 // pred_check_branch
          %153 = sbr.rel (%p151) target = $region24
        $region23: #{tpu_custom_call.1} parent=19 // pred_region
          %s154 = sand.u32 %s40, 1
          %s155 = scalar_lea.sflag [#allocation4], %s154
          %s156 = sand.u32 %s40, 1
          %s157 = smul.addr %s156, 2
          %s158 = scalar_lea.vmem [#allocation3], %s157
          %s159 = smul.u32 2, %s24
          %s161 = ssub.s32 32, 32
          %162 = vsyncadd %s155, %s161
          %s163 = smul.addr %s23, 8
          %s164 = sadd.s32 %s159, %s163
          %s165 = smul.addr %s164, 16
          %s166 = scalar_lea.hbm %s0, %s165
          %s168 = sshll.u32 %s158, 4
          %s169 = int_to_ptr.vmem [resolvable:$true] %s168
          %171 = dma.hbm_to_vmem [thread:$0]  %s166, 32, %s169, %s155
        $region24: #{tpu_custom_call.1} parent=19 // pred_fallthru
          _
        // Predicated region
        $region25: #{tpu_custom_call.1} parent=19 // pred_check
          %p172 = pneg %p76
        $region26: #{tpu_custom_call.1} parent=19 // pred_check_branch
          %174 = sbr.rel (%p172) target = $region28
        $region27: #{tpu_custom_call.1} parent=19 // pred_region
          %s175 = sand.u32 %s66, 1
          %s176 = scalar_lea.sflag [#allocation7], %s175
          %s177 = sand.u32 %s66, 1
          %s178 = smul.addr %s177, 384
          %s179 = scalar_lea.vmem [#allocation6], %s178
          %s180 = smul.u32 32, %s24
          %s182 = ssub.s32 6144, 6144
          %183 = vsyncadd %s176, %s182
          %s184 = smul.addr %s180, 3
          %s185 = smul.addr %s184, 64
          %s186 = scalar_lea.hbm %s1, %s185
          %s187 = sshll.u32 %s179, 4
          %s188 = int_to_ptr.vmem [resolvable:$true] %s187
          %193 = dma.hbm_to_vmem [thread:$0]  %s186, 6144, %s188, %s176, 192, 192, 12
        $region28: #{tpu_custom_call.1} parent=19 // pred_fallthru
          _
      $region20: #{tpu_custom_call.1} parent=5 // pred_fallthru
        _
      %p194 = scmp.le.s32.totalorder 1, %s16
      %p195 = scmp.lt.s32.totalorder %s16, 5
      %p196 = pnand %p194, %p195
      %p197 = pneg %p196
      // Predicated region
      $region29: #{tpu_custom_call.1} parent=5 // pred_check
        _
      $region30: #{tpu_custom_call.1} parent=5 // pred_check_branch
        %199 = sbr.rel (%p196) target = $region32
      $region31: #{tpu_custom_call.1} parent=5 // pred_region
        %s200 = ssub.s32 %s16, 1
        %s201 = sand.u32 %s43, 1
        %s202 = scalar_lea.sflag [#allocation4], %s201
        %s203 = sand.u32 %s43, 1
        %s204 = smul.addr %s203, 2
        %s205 = scalar_lea.vmem [#allocation3], %s204
        // Predicated region
        $region33: #{tpu_custom_call.1} parent=31 // pred_check
          %p206 = pneg %p56
        $region34: #{tpu_custom_call.1} parent=31 // pred_check_branch
          %208 = sbr.rel (%p206) target = $region36
        $region35: #{tpu_custom_call.1} parent=31 // pred_region
          %209 = dma.done %s202, 32
        $region36: #{tpu_custom_call.1} parent=31 // pred_fallthru
          _
        %s210 = sand.u32 %s69, 1
        %s211 = scalar_lea.sflag [#allocation7], %s210
        %s212 = sand.u32 %s69, 1
        %s213 = smul.addr %s212, 384
        %s214 = scalar_lea.vmem [#allocation6], %s213
        // Predicated region
        $region37: #{tpu_custom_call.1} parent=31 // pred_check
          %p215 = pneg %p82
        $region38: #{tpu_custom_call.1} parent=31 // pred_check_branch
          %217 = sbr.rel (%p215) target = $region40
        $region39: #{tpu_custom_call.1} parent=31 // pred_region
          %218 = dma.done %s211, 6144
        $region40: #{tpu_custom_call.1} parent=31 // pred_fallthru
          _
        %s219 = sand.u32 %s43, 1
        %s220 = scalar_lea.sflag [#allocation4], %s219
        %s221 = sand.u32 %s43, 1
        %s222 = smul.addr %s221, 2
        %s223 = scalar_lea.vmem [#allocation3], %s222
        %p224 = pneg %p56
        %p225 = pneg %p53
        %s226 = sand.u32 %s69, 1
        %s227 = scalar_lea.sflag [#allocation7], %s226
        %s228 = sand.u32 %s69, 1
        %s229 = smul.addr %s228, 384
        %s230 = scalar_lea.vmem [#allocation6], %s229
        %p231 = pneg %p82
        %p232 = pneg %p79
        %p233 = pneg %p103
        %p234 = pneg %p100
        %p235 = pneg %p129
        %p236 = pneg %p126
        %s237 = smul.u32 2, %s26
        %s238 = smul.u32 32, %s26
        %p240 = scmp.eq.s32.totalorder %s26, 0
        // Predicated region
        $region41: #{tpu_custom_call.1} parent=31 // pred_check
          %p241 = pneg %p240
        $region42: #{tpu_custom_call.1} parent=31 // pred_check_branch
          %243 = sbr.rel (%p241) target = $region44
        $region43: #{tpu_custom_call.1} parent=31 // pred_region
          %244 = vst [vmem:[#allocation2] sm:$0x3f] 0.0
        $region44: #{tpu_custom_call.1} parent=31 // pred_fallthru
          _
        %v245 = vld [vmem:[#allocation2] sm:$0x3f]
        %v246 = vld [vmem:[%s205] sm:$0x3]
        %v247 = vld [vmem:[%s214] sm:$0xff]
        %v248 = vld [vmem:[%s214 + $0x8] sm:$0xf]
        %v249 = vld [vmem:[%s214 + $0xc] sm:$0xff]
        %v250 = vld [vmem:[%s214 + $0x14] sm:$0xf]
        %v251 = vld [vmem:[%s214 + $0x18] sm:$0xff]
        %v252 = vld [vmem:[%s214 + $0x20] sm:$0xf]
        %v253 = vld [vmem:[%s214 + $0x24] sm:$0xff]
        %v254 = vld [vmem:[%s214 + $0x2c] sm:$0xf]
        %v255 = vld [vmem:[%s214 + $0x30] sm:$0xff]
        %v256 = vld [vmem:[%s214 + $0x38] sm:$0xf]
        %v257 = vld [vmem:[%s214 + $0x3c] sm:$0xff]
        %v258 = vld [vmem:[%s214 + $0x44] sm:$0xf]
        %v259 = vld [vmem:[%s214 + $0x48] sm:$0xff]
        %v260 = vld [vmem:[%s214 + $0x50] sm:$0xf]
        %v261 = vld [vmem:[%s214 + $0x54] sm:$0xff]
        %v262 = vld [vmem:[%s214 + $0x5c] sm:$0xf]
        %v263 = vld [vmem:[%s214 + $0x60] sm:$0xff]
        %v264 = vld [vmem:[%s214 + $0x68] sm:$0xf]
        %v265 = vld [vmem:[%s214 + $0x6c] sm:$0xff]
        %v266 = vld [vmem:[%s214 + $0x74] sm:$0xf]
        %v267 = vld [vmem:[%s214 + $0x78] sm:$0xff]
        %v268 = vld [vmem:[%s214 + $0x80] sm:$0xf]
        %v269 = vld [vmem:[%s214 + $0x84] sm:$0xff]
        %v270 = vld [vmem:[%s214 + $0x8c] sm:$0xf]
        %v271 = vld [vmem:[%s214 + $0x90] sm:$0xff]
        %v272 = vld [vmem:[%s214 + $0x98] sm:$0xf]
        %v273 = vld [vmem:[%s214 + $0x9c] sm:$0xff]
        %v274 = vld [vmem:[%s214 + $0xa4] sm:$0xf]
        %v275 = vld [vmem:[%s214 + $0xa8] sm:$0xff]
        %v276 = vld [vmem:[%s214 + $0xb0] sm:$0xf]
        %v277 = vld [vmem:[%s214 + $0xb4] sm:$0xff]
        %v278 = vld [vmem:[%s214 + $0xbc] sm:$0xf]
        %v279 = vld [vmem:[%s214 + $0xc0] sm:$0xff]
        %v280 = vld [vmem:[%s214 + $0xc8] sm:$0xf]
        %v281 = vld [vmem:[%s214 + $0xcc] sm:$0xff]
        %v282 = vld [vmem:[%s214 + $0xd4] sm:$0xf]
        %v283 = vld [vmem:[%s214 + $0xd8] sm:$0xff]
        %v284 = vld [vmem:[%s214 + $0xe0] sm:$0xf]
        %v285 = vld [vmem:[%s214 + $0xe4] sm:$0xff]
        %v286 = vld [vmem:[%s214 + $0xec] sm:$0xf]
        %v287 = vld [vmem:[%s214 + $0xf0] sm:$0xff]
        %v288 = vld [vmem:[%s214 + $0xf8] sm:$0xf]
        %v289 = vld [vmem:[%s214 + $0xfc] sm:$0xff]
        %v290 = vld [vmem:[%s214 + $0x104] sm:$0xf]
        %v291 = vld [vmem:[%s214 + $0x108] sm:$0xff]
        %v292 = vld [vmem:[%s214 + $0x110] sm:$0xf]
        %v293 = vld [vmem:[%s214 + $0x114] sm:$0xff]
        %v294 = vld [vmem:[%s214 + $0x11c] sm:$0xf]
        %v295 = vld [vmem:[%s214 + $0x120] sm:$0xff]
        %v296 = vld [vmem:[%s214 + $0x128] sm:$0xf]
        %v297 = vld [vmem:[%s214 + $0x12c] sm:$0xff]
        %v298 = vld [vmem:[%s214 + $0x134] sm:$0xf]
        %v299 = vld [vmem:[%s214 + $0x138] sm:$0xff]
        %v300 = vld [vmem:[%s214 + $0x140] sm:$0xf]
        %v301 = vld [vmem:[%s214 + $0x144] sm:$0xff]
        %v302 = vld [vmem:[%s214 + $0x14c] sm:$0xf]
        %v303 = vld [vmem:[%s214 + $0x150] sm:$0xff]
        %v304 = vld [vmem:[%s214 + $0x158] sm:$0xf]
        %v305 = vld [vmem:[%s214 + $0x15c] sm:$0xff]
        %v306 = vld [vmem:[%s214 + $0x164] sm:$0xf]
        %v307 = vld [vmem:[%s214 + $0x168] sm:$0xff]
        %v308 = vld [vmem:[%s214 + $0x170] sm:$0xf]
        %v309 = vld [vmem:[%s214 + $0x174] sm:$0xff]
        %v310 = vld [vmem:[%s214 + $0x17c] sm:$0xf]
        %v313 = vunpack.c.l.s4 1966171168
        %v314 = vunpack.c.0.s8 %v313
        %v315 = vlaneseq
        %v316 = vshrl.u32 %v315, 7
        %v317 = vsub.s32 %v314, %v316
        %v318 = vrot.slane %v246, %v317
        %v319 = vcombine.high %v318, %v318
        %v321 = vunpack.c.l.s4 1966171168
        %v322 = vunpack.c.0.s8 %v321
        %v323 = vlaneseq
        %v324 = vshrl.u32 %v323, 7
        %v325 = vsub.s32 %v322, %v324
        %v326 = vrot.slane %v318, %v325
        %v328 = vunpack.c.l.s4 1966171168
        %v329 = vunpack.c.0.s8 %v328
        %v330 = vlaneseq
        %v331 = vshrl.u32 %v330, 7
        %v332 = vsub.s32 %v329, %v331
        %v333 = vrot.slane %v319, %v332
        %v400 = vunpack.c.l.b16 %v247
        %v401 = vunpack.c.h.b16 %v247
        %v402 = vunpack.c.l.b16 %v248
        %v403 = vunpack.c.l.b16 %v249
        %v404 = vunpack.c.h.b16 %v249
        %v405 = vunpack.c.l.b16 %v250
        %v406 = vunpack.c.l.b16 %v251
        %v407 = vunpack.c.h.b16 %v251
        %v408 = vunpack.c.l.b16 %v252
        %v409 = vunpack.c.l.b16 %v253
        %v410 = vunpack.c.h.b16 %v253
        %v411 = vunpack.c.l.b16 %v254
        %v412 = vunpack.c.l.b16 %v255
        %v413 = vunpack.c.h.b16 %v255
        %v414 = vunpack.c.l.b16 %v256
        %v415 = vunpack.c.l.b16 %v257
        %v416 = vunpack.c.h.b16 %v257
        %v417 = vunpack.c.l.b16 %v258
        %v418 = vunpack.c.l.b16 %v259
        %v419 = vunpack.c.h.b16 %v259
        %v420 = vunpack.c.l.b16 %v260
        %v421 = vunpack.c.l.b16 %v261
        %v422 = vunpack.c.h.b16 %v261
        %v423 = vunpack.c.l.b16 %v262
        %v424 = vunpack.c.l.b16 %v263
        %v425 = vunpack.c.h.b16 %v263
        %v426 = vunpack.c.l.b16 %v264
        %v427 = vunpack.c.l.b16 %v265
        %v428 = vunpack.c.h.b16 %v265
        %v429 = vunpack.c.l.b16 %v266
        %v430 = vunpack.c.l.b16 %v267
        %v431 = vunpack.c.h.b16 %v267
        %v432 = vunpack.c.l.b16 %v268
        %v433 = vunpack.c.l.b16 %v269
        %v434 = vunpack.c.h.b16 %v269
        %v435 = vunpack.c.l.b16 %v270
        %v436 = vunpack.c.l.b16 %v271
        %v437 = vunpack.c.h.b16 %v271
        %v438 = vunpack.c.l.b16 %v272
        %v439 = vunpack.c.l.b16 %v273
        %v440 = vunpack.c.h.b16 %v273
        %v441 = vunpack.c.l.b16 %v274
        %v442 = vunpack.c.l.b16 %v275
        %v443 = vunpack.c.h.b16 %v275
        %v444 = vunpack.c.l.b16 %v276
        %v445 = vunpack.c.l.b16 %v277
        %v446 = vunpack.c.h.b16 %v277
        %v447 = vunpack.c.l.b16 %v278
        %v448 = vunpack.c.l.b16 %v279
        %v449 = vunpack.c.h.b16 %v279
        %v450 = vunpack.c.l.b16 %v280
        %v451 = vunpack.c.l.b16 %v281
        %v452 = vunpack.c.h.b16 %v281
        %v453 = vunpack.c.l.b16 %v282
        %v454 = vunpack.c.l.b16 %v283
        %v455 = vunpack.c.h.b16 %v283
        %v456 = vunpack.c.l.b16 %v284
        %v457 = vunpack.c.l.b16 %v285
        %v458 = vunpack.c.h.b16 %v285
        %v459 = vunpack.c.l.b16 %v286
        %v460 = vunpack.c.l.b16 %v287
        %v461 = vunpack.c.h.b16 %v287
        %v462 = vunpack.c.l.b16 %v288
        %v463 = vunpack.c.l.b16 %v289
        %v464 = vunpack.c.h.b16 %v289
        %v465 = vunpack.c.l.b16 %v290
        %v466 = vunpack.c.l.b16 %v291
        %v467 = vunpack.c.h.b16 %v291
        %v468 = vunpack.c.l.b16 %v292
        %v469 = vunpack.c.l.b16 %v293
        %v470 = vunpack.c.h.b16 %v293
        %v471 = vunpack.c.l.b16 %v294
        %v472 = vunpack.c.l.b16 %v295
        %v473 = vunpack.c.h.b16 %v295
        %v474 = vunpack.c.l.b16 %v296
        %v475 = vunpack.c.l.b16 %v297
        %v476 = vunpack.c.h.b16 %v297
        %v477 = vunpack.c.l.b16 %v298
        %v478 = vunpack.c.l.b16 %v299
        %v479 = vunpack.c.h.b16 %v299
        %v480 = vunpack.c.l.b16 %v300
        %v481 = vunpack.c.l.b16 %v301
        %v482 = vunpack.c.h.b16 %v301
        %v483 = vunpack.c.l.b16 %v302
        %v484 = vunpack.c.l.b16 %v303
        %v485 = vunpack.c.h.b16 %v303
        %v486 = vunpack.c.l.b16 %v304
        %v487 = vunpack.c.l.b16 %v305
        %v488 = vunpack.c.h.b16 %v305
        %v489 = vunpack.c.l.b16 %v306
        %v490 = vunpack.c.l.b16 %v307
        %v491 = vunpack.c.h.b16 %v307
        %v492 = vunpack.c.l.b16 %v308
        %v493 = vunpack.c.l.b16 %v309
        %v494 = vunpack.c.h.b16 %v309
        %v495 = vunpack.c.l.b16 %v310
        %v496 = vpack.c.b16 %v403, %v400
        %v497 = vpack.c.b16 %v404, %v401
        %v498 = vpack.c.b16 %v405, %v402
        %v499 = vpack.c.b16 %v409, %v406
        %v500 = vpack.c.b16 %v410, %v407
        %v501 = vpack.c.b16 %v411, %v408
        %v502 = vpack.c.b16 %v415, %v412
        %v503 = vpack.c.b16 %v416, %v413
        %v504 = vpack.c.b16 %v417, %v414
        %v505 = vpack.c.b16 %v421, %v418
        %v506 = vpack.c.b16 %v422, %v419
        %v507 = vpack.c.b16 %v423, %v420
        %v508 = vpack.c.b16 %v427, %v424
        %v509 = vpack.c.b16 %v428, %v425
        %v510 = vpack.c.b16 %v429, %v426
        %v511 = vpack.c.b16 %v433, %v430
        %v512 = vpack.c.b16 %v434, %v431
        %v513 = vpack.c.b16 %v435, %v432
        %v514 = vpack.c.b16 %v439, %v436
        %v515 = vpack.c.b16 %v440, %v437
        %v516 = vpack.c.b16 %v441, %v438
        %v517 = vpack.c.b16 %v445, %v442
        %v518 = vpack.c.b16 %v446, %v443
        %v519 = vpack.c.b16 %v447, %v444
        %v520 = vpack.c.b16 %v451, %v448
        %v521 = vpack.c.b16 %v452, %v449
        %v522 = vpack.c.b16 %v453, %v450
        %v523 = vpack.c.b16 %v457, %v454
        %v524 = vpack.c.b16 %v458, %v455
        %v525 = vpack.c.b16 %v459, %v456
        %v526 = vpack.c.b16 %v463, %v460
        %v527 = vpack.c.b16 %v464, %v461
        %v528 = vpack.c.b16 %v465, %v462
        %v529 = vpack.c.b16 %v469, %v466
        %v530 = vpack.c.b16 %v470, %v467
        %v531 = vpack.c.b16 %v471, %v468
        %v532 = vpack.c.b16 %v475, %v472
        %v533 = vpack.c.b16 %v476, %v473
        %v534 = vpack.c.b16 %v477, %v474
        %v535 = vpack.c.b16 %v481, %v478
        %v536 = vpack.c.b16 %v482, %v479
        %v537 = vpack.c.b16 %v483, %v480
        %v538 = vpack.c.b16 %v487, %v484
        %v539 = vpack.c.b16 %v488, %v485
        %v540 = vpack.c.b16 %v489, %v486
        %v541 = vpack.c.b16 %v493, %v490
        %v542 = vpack.c.b16 %v494, %v491
        %v543 = vpack.c.b16 %v495, %v492
        %592 = vmatprep.subr.bf16.mxu0 %v518
        %593 = vmatpush1.bf16.msra.mxu0 %v517
        %594 = vmatprep.subr.bf16.mxu0 %v515
        %595 = vmatpush1.bf16.msra.mxu0 %v514
        %596 = vmatprep.subr.bf16.mxu0 %v512
        %597 = vmatpush1.bf16.msra.mxu0 %v511
        %598 = vmatprep.subr.bf16.mxu0 %v509
        %599 = vmatpush1.bf16.msra.mxu0 %v508
        %600 = vmatprep.subr.bf16.mxu0 %v506
        %601 = vmatpush1.bf16.msra.mxu0 %v505
        %602 = vmatprep.subr.bf16.mxu0 %v503
        %603 = vmatpush1.bf16.msra.mxu0 %v502
        %604 = vmatprep.subr.bf16.mxu0 %v500
        %605 = vmatpush1.bf16.msra.mxu0 %v499
        %606 = vmatprep.subr.bf16.mxu0 %v497
        %607 = vmatpush1.bf16.msra.mxu0 %v496
        %608 = vmatprep.subr.bf16.mxu0 %v542
        %609 = vmatpush2.bf16.msra.mxu0 %v541
        %610 = vmatprep.subr.bf16.mxu0 %v539
        %611 = vmatpush2.bf16.msra.mxu0 %v538
        %612 = vmatprep.subr.bf16.mxu0 %v536
        %613 = vmatpush2.bf16.msra.mxu0 %v535
        %614 = vmatprep.subr.bf16.mxu0 %v533
        %615 = vmatpush2.bf16.msra.mxu0 %v532
        %616 = vmatprep.subr.bf16.mxu0 %v530
        %617 = vmatpush2.bf16.msra.mxu0 %v529
        %618 = vmatprep.subr.bf16.mxu0 %v527
        %619 = vmatpush2.bf16.msra.mxu0 %v526
        %620 = vmatprep.subr.bf16.mxu0 %v524
        %621 = vmatpush2.bf16.msra.mxu0 %v523
        %622 = vmatprep.subr.bf16.mxu0 %v521
        %623 = vmatpush2.bf16.msra.mxu0 %v520
        %624 = vmatprep.mubr.bf16.mxu0 %v333
        %625 = vmatmul.mubr.bf16.gmra.mxu0 %v326
        %v626 = vpop.f32.mrf.mxu0
        %v627 = vadd.f32 0.0, %v626
        %v628 = vpop.f32.mrf.mxu0
        %v629 = vadd.f32 0.0, %v628
        %v630 = vpop.f32.mrf.mxu0
        %v631 = vpop.f32.mrf.mxu0
        %632 = vdwg.mxu0
        %633 = vmatprep.subr.bf16.mxu0 0
        %634 = vmatpush1.bf16.msra.mxu0 %v519
        %635 = vmatprep.subr.bf16.mxu0 0
        %636 = vmatpush1.bf16.msra.mxu0 %v516
        %637 = vmatprep.subr.bf16.mxu0 0
        %638 = vmatpush1.bf16.msra.mxu0 %v513
        %639 = vmatprep.subr.bf16.mxu0 0
        %640 = vmatpush1.bf16.msra.mxu0 %v510
        %641 = vmatprep.subr.bf16.mxu0 0
        %642 = vmatpush1.bf16.msra.mxu0 %v507
        %643 = vmatprep.subr.bf16.mxu0 0
        %644 = vmatpush1.bf16.msra.mxu0 %v504
        %645 = vmatprep.subr.bf16.mxu0 0
        %646 = vmatpush1.bf16.msra.mxu0 %v501
        %647 = vmatprep.subr.bf16.mxu0 0
        %648 = vmatpush1.bf16.msra.mxu0 %v498
        %649 = vmatprep.subr.bf16.mxu0 0
        %650 = vmatpush2.bf16.msra.mxu0 %v543
        %651 = vmatprep.subr.bf16.mxu0 0
        %652 = vmatpush2.bf16.msra.mxu0 %v540
        %653 = vmatprep.subr.bf16.mxu0 0
        %654 = vmatpush2.bf16.msra.mxu0 %v537
        %655 = vmatprep.subr.bf16.mxu0 0
        %656 = vmatpush2.bf16.msra.mxu0 %v534
        %657 = vmatprep.subr.bf16.mxu0 0
        %658 = vmatpush2.bf16.msra.mxu0 %v531
        %659 = vmatprep.subr.bf16.mxu0 0
        %660 = vmatpush2.bf16.msra.mxu0 %v528
        %661 = vmatprep.subr.bf16.mxu0 0
        %662 = vmatpush2.bf16.msra.mxu0 %v525
        %663 = vmatprep.subr.bf16.mxu0 0
        %664 = vmatpush2.bf16.msra.mxu0 %v522
        %665 = vmatprep.mubr.bf16.mxu0 %v333
        %666 = vmatmul.mubr.bf16.gmra.mxu0 %v326
        %v667 = vpop.f32.mrf.mxu0
        %v668 = vadd.f32 0.0, %v667
        %v669 = vpop.f32.mrf.mxu0
        %v670 = vpop.f32.mrf.mxu0
        %v671 = vpop.f32.mrf.mxu0
        %672 = vdwg.mxu0
        %v676 = vcombine.low %v627, %v629
        %v678 = vunpack.c.l.s4 1983009808
        %v679 = vunpack.c.0.s8 %v678
        %v680 = vlaneseq
        %v681 = vshrl.u32 %v680, 7
        %v682 = vsub.s32 %v679, %v681
        %v683 = vrot.slane %v676, %v682
        %v685 = vunpack.c.l.s4 1983009808
        %v686 = vunpack.c.0.s8 %v685
        %v687 = vlaneseq
        %v688 = vshrl.u32 %v687, 7
        %v689 = vsub.s32 %v686, %v688
        %v690 = vrot.slane %v668, %v689
        %v691 = vcombine.low %v683, %v690
        %v693 = vadd.f32 %v245, %v691
        %694 = vst [vmem:[#allocation2] sm:$0x3f] %v693
        %p695 = scmp.eq.s32.totalorder %s26, 3
        // Predicated region
        $region45: #{tpu_custom_call.1} parent=31 // pred_check
          %p696 = pneg %p695
        $region46: #{tpu_custom_call.1} parent=31 // pred_check_branch
          %698 = sbr.rel (%p696) target = $region48
        $region47: #{tpu_custom_call.1} parent=31 // pred_region
          %v699 = vld [vmem:[#allocation2] sm:$0x3f]
          %v700 = vld [vmem:[%s2] sm:$0x7]
          %v702 = vlaneseq
          %v703 = vshrl.u32 %v702, 7
          %v704 = vsub.s32 0, %v703
          %v705 = vrot.slane %v700, %v704
          %v706 = vlaneseq
          %v707 = vshrl.u32 %v706, 7
          %v708 = vsub.s32 1, %v707
          %v709 = vrot.slane %v700, %v708
          %v710 = vlaneseq
          %v711 = vshrl.u32 %v710, 7
          %v712 = vsub.s32 2, %v711
          %v713 = vrot.slane %v700, %v712
          %v714 = vcombine.low %v705, %v709
          %v716 = vunpack.c.l.s4 1983009808
          %v717 = vunpack.c.0.s8 %v716
          %v718 = vlaneseq
          %v719 = vshrl.u32 %v718, 7
          %v720 = vsub.s32 %v717, %v719
          %v721 = vrot.slane %v714, %v720
          %v723 = vunpack.c.l.s4 1983009808
          %v724 = vunpack.c.0.s8 %v723
          %v725 = vlaneseq
          %v726 = vshrl.u32 %v725, 7
          %v727 = vsub.s32 %v724, %v726
          %v728 = vrot.slane %v713, %v727
          %v729 = vcombine.low %v721, %v728
          %v731 = vadd.f32 %v699, %v729
          %vm732 = vcmask 1041408
          %v733 = vsel %vm732, %v731, -inf
          %734 = vmax.xlane.f32.xlu0 %v733
          %v735 = vpop.xlane.xlu0 %734
          %v736 = vsub.f32 %v731, %v735
          %v737 = vmul.f32 %v736, 1.442695
          %v738 = vpow.pop %v737
          %v739 = vsel %vm732, %v738, 0.0
          %740 = vadd.xlane.f32.xlu0 %v739
          %v741 = vpop.xlane.xlu0 %740
          %v742 = vrcp.pop %v741
          %v743 = vmul.f32 %v738, %v742
          %v746 = vunpack.c.l.s4 1983009808
          %v747 = vunpack.c.0.s8 %v746
          %v748 = vlaneseq
          %v749 = vshrl.u32 %v748, 7
          %v750 = vsub.s32 %v747, %v749
          %v751 = vrot.slane %v731, %v750
          %v752 = vcombine.high %v751, %v751
          %v754 = vsel %vm732, %v752, -inf
          %755 = vmax.xlane.f32.xlu0 %v754
          %v756 = vpop.xlane.xlu0 %755
          %v757 = vrot.slane %v731, 2
          %v759 = vsub.f32 %v757, %v756
          %v760 = vmul.f32 %v759, 1.442695
          %v761 = vpow.pop %v760
          %v762 = vsel %vm732, %v761, 0.0
          %763 = vadd.xlane.f32.xlu0 %v762
          %v764 = vpop.xlane.xlu0 %763
          %v765 = vrcp.pop %v764
          %v766 = vmul.f32 %v761, %v765
          %v767 = vadd.f32 %v743, %v766
          %v768 = vcombine.high %v731, %v731
          %v770 = vunpack.c.l.s4 1983009808
          %v771 = vunpack.c.0.s8 %v770
          %v772 = vlaneseq
          %v773 = vshrl.u32 %v772, 7
          %v774 = vsub.s32 %v771, %v773
          %v775 = vrot.slane %v768, %v774
          %v777 = vsel %vm732, %v775, -inf
          %778 = vmax.xlane.f32.xlu0 %v777
          %v779 = vpop.xlane.xlu0 %778
          %v780 = vrot.slane %v731, 4
          %v782 = vsub.f32 %v780, %v779
          %v783 = vmul.f32 %v782, 1.442695
          %v784 = vpow.pop %v783
          %v785 = vsel %vm732, %v784, 0.0
          %786 = vadd.xlane.f32.xlu0 %v785
          %v787 = vpop.xlane.xlu0 %786
          %v788 = vrcp.pop %v787
          %v789 = vmul.f32 %v784, %v788
          %v790 = vadd.f32 %v767, %v789
          %v791 = vmul.f32 %v790, 0.33333334
          %792 = vst [vmem:[#allocation8] sm:$0x3] %v791
        $region48: #{tpu_custom_call.1} parent=31 // pred_fallthru
          _
        // Predicated region
        $region49: #{tpu_custom_call.1} parent=31 // pred_check
          %p793 = pneg %p126
        $region50: #{tpu_custom_call.1} parent=31 // pred_check_branch
          %795 = sbr.rel (%p793) target = $region52
        $region51: #{tpu_custom_call.1} parent=31 // pred_region
          %s797 = ssub.s32 32, 32
          %798 = vsyncadd [#allocation5], %s797
          %s799 = smul.addr %s25, 32
          %s800 = scalar_lea.hbm %s3, %s799
          %s802 = sshll.u32 [#allocation8], 4
          %s803 = int_to_ptr.vmem [resolvable:$true] %s802
          %805 = dma.vmem_to_hbm [thread:$0]  %s803, 32, %s800, [#allocation5]
        $region52: #{tpu_custom_call.1} parent=31 // pred_fallthru
          _
        // Predicated region
        $region53: #{tpu_custom_call.1} parent=31 // pred_check
          %p806 = pneg %p126
        $region54: #{tpu_custom_call.1} parent=31 // pred_check_branch
          %808 = sbr.rel (%p806) target = $region56
        $region55: #{tpu_custom_call.1} parent=31 // pred_region
          %809 = dma.done [#allocation5], 32
        $region56: #{tpu_custom_call.1} parent=31 // pred_fallthru
          _
      $region32: #{tpu_custom_call.1} parent=5 // pred_fallthru
        _
      %p810 = scmp.le.s32.totalorder 2, %s16
      // Predicated region
      $region57: #{tpu_custom_call.1} parent=5 // pred_check
        %p811 = pneg %p810
      $region58: #{tpu_custom_call.1} parent=5 // pred_check_branch
        %813 = sbr.rel (%p811) target = $region60
      $region59: #{tpu_custom_call.1} parent=5 // pred_region
        %s814 = ssub.s32 %s16, 2
      $region60: #{tpu_custom_call.1} parent=5 // pred_fallthru
        _
    $region6: #{tpu_custom_call.1} parent=1 // loop_footer
      %s20 = sadd.s32 1, %s16
    $region7: #{tpu_custom_call.1} parent=1 // loop_footer_branch
      %15 = sbr.rel target = $region3
    $region8: #{tpu_custom_call.1} parent=1 // loop_exit
      _
    %815 = vsyncpa [#allocation4], 1
    %s816 = scalar_lea.sflag [#allocation4], 1
    %817 = vsyncpa %s816, 1
    %818 = vsyncpa [#allocation7], 1
    %s819 = scalar_lea.sflag [#allocation7], 1
    %820 = vsyncpa %s819, 1
    %821 = vsyncpa [#allocation5], 1
    %s822 = scalar_lea.sflag [#allocation5], 1
    %823 = vsyncpa %s822, 1

</llo_original>
